<compile_context>
chip_gen: v5e
topology: v5e:2x2
jax: 0.10.0
libtpu: 0.0.40
codegen_flags: <defaults>
</compile_context>

<pallas_src>
import functools

import jax
import jax.numpy as jnp
from jax.experimental import pallas as pl
from jax.experimental.pallas import tpu as pltpu


_IGNORE_INDEX = -100      # PyTorch default for F.cross_entropy
_NEG_FILL = -1e30         # finite fill for masked (out-of-bounds) class columns


def _round_up(x, m):
    return (x + m - 1) // m * m


def _cdiv(a, b):
    return (a + b - 1) // b


def _ce_lse_kernel(x_ref, lse_ref, m_sc, l_sc, *, c_rem, mask_tail):
    """One (row-tile, class-chunk) grid step of a streaming log-sum-exp.

    x_ref   : (TILE_N, TILE_C) logits block (input dtype; f32 only on the exp path)
    lse_ref : (TILE_N, 1) f32 per-row logsumexp (written on the last class chunk)
    m_sc    : (TILE_N, 1) f32 running max
    l_sc    : (TILE_N, 1) f32 running sum of exp
    c_rem   : number of valid columns in the LAST class chunk (static Python int)
    mask_tail: True iff the last class chunk has out-of-bounds (garbage) columns
    """
    j = pl.program_id(1)
    last_j = pl.num_programs(1) - 1

    @pl.when(j == 0)
    def _():
        m_sc[...] = jnp.full_like(m_sc, -jnp.inf)
        l_sc[...] = jnp.zeros_like(l_sc)

    x = x_ref[...]                                    # (TILE_N, TILE_C), input dtype

    def update(xb):
        # Per-chunk max in the input dtype (packed bf16 VALU on v6e/v7x), then f32
        # for the exp / accumulate path.
        m_chunk = jnp.max(xb, axis=-1, keepdims=True).astype(jnp.float32)
        m_prev = m_sc[...]
        m_new = jnp.maximum(m_prev, m_chunk)
        xf = xb.astype(jnp.float32)
        alpha = jnp.exp(m_prev - m_new)               # rescale of previous partial sum
        l_sc[...] = alpha * l_sc[...] + jnp.sum(jnp.exp(xf - m_new),
                                                axis=-1, keepdims=True)
        m_sc[...] = m_new

    if mask_tail:
        # Only the final class chunk contains out-of-bounds columns; mask them there
        # with a *static* column limit and keep every other chunk mask-free.
        @pl.when(j != last_j)
        def _():
            update(x)

        @pl.when(j == last_j)
        def _():
            col = jax.lax.broadcasted_iota(jnp.int32, x.shape, 1)
            fill = jnp.array(_NEG_FILL, dtype=x.dtype)
            update(jnp.where(col < c_rem, x, fill))
    else:
        update(x)

    # ---- finalize on the last class chunk ----
    @pl.when(j == last_j)
    def _():
        lse_ref[...] = m_sc[...] + jnp.log(l_sc[...])


def cross_entropy(output, target, reduction="mean", ignore_index=_IGNORE_INDEX,
                  max_tile_n=256, max_tile_c=8192):
    """Pallas TPU equivalent of F.cross_entropy(output, target, reduction=...)
    for output (N, C) float logits and target (N,) integer class indices."""
    n, c = output.shape
    itemsize = jnp.dtype(output.dtype).itemsize

    # ---- row (sublane) tiling --------------------------------------------------
    sub = max(8, 32 // max(itemsize, 1))          # 8 f32, 16 bf16/f16, 32 int8/fp8
    tile_n = min(_round_up(n, sub), max(_round_up(max_tile_n, sub), sub))
    grid_n = _cdiv(n, tile_n)
    # v7x megacore: make sure the "parallel" row axis has >= 2 tiles when N allows
    # so both TensorCores get work (no-op on single-core v5e/v6e).
    if grid_n < 2 and n > sub:
        tile_n = _round_up(_cdiv(n, 2), sub)
        grid_n = _cdiv(n, tile_n)

    # ---- class (lane) tiling ----------------------------------------------------
    cap = max(_round_up(max_tile_c, 128), 128)
    if c <= cap:
        tile_c, grid_c = c, 1                     # whole row in a single chunk
        c_rem, mask_tail = c, False
    else:
        tile_c = cap                              # multiple of 128
        grid_c = _cdiv(c, tile_c)
        c_rem = c - (grid_c - 1) * tile_c
        mask_tail = c_rem != tile_c               # ragged class tail -> in-kernel mask

    block_bytes = tile_n * tile_c * itemsize
    # Double-buffered logits block + headroom for output/scratch; stays well under
    # the v7x 64 MiB per-TC VMEM (and far under v5e/v6e's 128 MiB).
    vmem_limit = int(max(2 * block_bytes + (4 << 20), 16 << 20))

    lse_col = pl.pallas_call(
        functools.partial(_ce_lse_kernel, c_rem=c_rem, mask_tail=mask_tail),
        out_shape=jax.ShapeDtypeStruct((grid_n * tile_n, 1), jnp.float32),
        grid_spec=pltpu.PrefetchScalarGridSpec(
            num_scalar_prefetch=0,
            grid=(grid_n, grid_c),
            in_specs=[pl.BlockSpec((tile_n, tile_c), lambda i, j: (i, j))],
            out_specs=pl.BlockSpec((tile_n, 1), lambda i, j: (i, 0)),
            scratch_shapes=[
                pltpu.VMEM((tile_n, 1), jnp.float32),   # running max
                pltpu.VMEM((tile_n, 1), jnp.float32),   # running sum-exp
            ],
        ),
        compiler_params=pltpu.CompilerParams(
            dimension_semantics=("parallel", "arbitrary"),
            vmem_limit_bytes=vmem_limit,
        ),
        cost_estimate=pl.CostEstimate(
            flops=4 * n * c,
            transcendentals=n * c,
            bytes_accessed=n * c * itemsize + grid_n * tile_n * 4,
        ),
    )(output)

    lse = lse_col[:n, 0]                          # garbage tail rows sliced off

    # Target-logit pick: an N-element gather in the wrapper (negligible vs N*C),
    # keeping the kernel's inner loop free of per-logit iota/compare/select work.
    tgt = target.astype(jnp.int32)
    safe_tgt = jnp.clip(tgt, 0, c - 1)
    picked = jnp.take_along_axis(output, safe_tgt[:, None], axis=-1)[:, 0]
    picked = picked.astype(jnp.float32)

    valid = tgt != ignore_index
    per_sample = jnp.where(valid, lse - picked, 0.0)

    if reduction == "none":
        return per_sample
    total = jnp.sum(per_sample)
    if reduction == "sum":
        return total
    # 'mean': divide by the number of non-ignored targets (NaN if all ignored,
    # which matches PyTorch).
    count = jnp.sum(valid.astype(jnp.float32))
    return total / count


if __name__ == "__main__":
    key = jax.random.PRNGKey(0)
    k1, k2, k3, k4, k5, k6 = jax.random.split(key, 6)

    # Case 1: small (N=8, C=100) -- single class chunk (tile_c == C, not a multiple
    # of 128, no padding) plus an ignored label (PyTorch default ignore_index=-100).
    N, C = 8, 100
    logits = jax.random.normal(k1, (N, C), dtype=jnp.float32)
    labels = jax.random.randint(k2, (N,), 0, C, dtype=jnp.int32)
    labels = labels.at[3].set(_IGNORE_INDEX)

    loss = cross_entropy(logits, labels, reduction="mean")
    jax.block_until_ready(loss)

    logp = jax.nn.log_softmax(logits, axis=-1)
    nll = -jnp.take_along_axis(logp, jnp.clip(labels, 0, C - 1)[:, None], axis=-1)[:, 0]
    valid = labels != _IGNORE_INDEX
    ref = jnp.sum(jnp.where(valid, nll, 0.0)) / jnp.sum(valid)
    assert jnp.allclose(loss, ref, rtol=1e-5, atol=1e-5), (loss, ref)

    # Case 2: ragged everywhere -- N=13 (ragged row tile + 2 row tiles for the
    # parallel axis), C=300 with max_tile_c=128 (3 class chunks, 44-column tail
    # masked in-kernel).  Exercises the streaming-LSE + tail-mask path.
    N2, C2 = 13, 300
    logits2 = jax.random.normal(k3, (N2, C2), dtype=jnp.float32)
    labels2 = jax.random.randint(k4, (N2,), 0, C2, dtype=jnp.int32)
    loss2 = cross_entropy(logits2, labels2, reduction="mean", max_tile_c=128)
    jax.block_until_ready(loss2)

    logp2 = jax.nn.log_softmax(logits2, axis=-1)
    ref2 = -jnp.mean(jnp.take_along_axis(logp2, labels2[:, None], axis=-1))
    assert jnp.allclose(loss2, ref2, rtol=1e-5, atol=1e-5), (loss2, ref2)

    # Case 3: bf16 logits (16-row sublane tiling), 'sum' and 'none' reductions.
    N3, C3 = 12, 200
    logits3 = jax.random.normal(k5, (N3, C3), dtype=jnp.bfloat16)
    labels3 = jax.random.randint(k6, (N3,), 0, C3, dtype=jnp.int32)
    loss3_sum = cross_entropy(logits3, labels3, reduction="sum")
    loss3_none = cross_entropy(logits3, labels3, reduction="none")
    jax.block_until_ready((loss3_sum, loss3_none))

    logp3 = jax.nn.log_softmax(logits3.astype(jnp.float32), axis=-1)
    nll3 = -jnp.take_along_axis(logp3, labels3[:, None], axis=-1)[:, 0]
    assert jnp.allclose(loss3_none, nll3, rtol=1e-4, atol=1e-4), (loss3_none, nll3)
    assert jnp.allclose(loss3_sum, jnp.sum(nll3), rtol=1e-4, atol=1e-4), (loss3_sum,)

    print("KERNEL_OK")
</pallas_src>

<mosaic_0001>
module attributes {stable_mosaic.version = 11 : i64} {
  func.func @_ce_lse_kernel(%arg0: i32, %arg1: i32, %arg2: memref<8x100xf32, #tpu.memory_space<vmem>>, %arg3: memref<8x1xf32, #tpu.memory_space<vmem>>, %arg4: memref<8x1xf32, #tpu.memory_space<vmem>>, %arg5: memref<8x1xf32, #tpu.memory_space<vmem>>) attributes {dimension_semantics = [#tpu.dimension_semantics<parallel>, #tpu.dimension_semantics<arbitrary>], iteration_bounds = array<i64: 1, 1>, scalar_prefetch = 0 : i64, scratch_operands = 2 : i64, tpu.core_type = #tpu.core_type<tc>, window_params = [{transform_indices = @transform_0, window_bounds = array<i64: 8, 100>}, {transform_indices = @transform_1, window_bounds = array<i64: 8, 1>}]} {
    %c0_i32 = arith.constant 0 : i32
    %0 = arith.cmpi eq, %arg1, %c0_i32 : i32
    %1 = arith.extui %0 : i1 to i32
    %c0_i32_0 = arith.constant 0 : i32
    %2 = arith.cmpi ne, %1, %c0_i32_0 : i32
    scf.if %2 {
      %cst_13 = arith.constant 0xFF800000 : f32
      %23 = vector.broadcast %cst_13 : f32 to vector<8x1xf32>
      %c0_14 = arith.constant 0 : index
      %c0_15 = arith.constant 0 : index
      %24 = vector.load %arg4[%c0_14, %c0_15] : memref<8x1xf32, #tpu.memory_space<vmem>>, vector<8x1xf32>
      tpu.vector_store %arg4[%c0_14, %c0_15], %23 {strides = array<i32>} : memref<8x1xf32, #tpu.memory_space<vmem>>, vector<8x1xf32>,
      %cst_16 = arith.constant 0.000000e+00 : f32
      %25 = vector.broadcast %cst_16 : f32 to vector<8x1xf32>
      %c0_17 = arith.constant 0 : index
      %c0_18 = arith.constant 0 : index
      %26 = vector.load %arg5[%c0_17, %c0_18] : memref<8x1xf32, #tpu.memory_space<vmem>>, vector<8x1xf32>
      tpu.vector_store %arg5[%c0_17, %c0_18], %25 {strides = array<i32>} : memref<8x1xf32, #tpu.memory_space<vmem>>, vector<8x1xf32>,
    } else {
    }
    %c0 = arith.constant 0 : index
    %c0_1 = arith.constant 0 : index
    %3 = vector.load %arg2[%c0, %c0_1] : memref<8x100xf32, #tpu.memory_space<vmem>>, vector<8x100xf32>
    %cst = arith.constant dense<0xFF800000> : vector<8xf32>
    %4 = vector.multi_reduction <maximumf>, %3, %cst [1] : vector<8x100xf32> to vector<8xf32>
    %5 = vector.shape_cast %4 : vector<8xf32> to vector<8x1xf32>
    %c0_2 = arith.constant 0 : index
    %c0_3 = arith.constant 0 : index
    %6 = vector.load %arg4[%c0_2, %c0_3] : memref<8x1xf32, #tpu.memory_space<vmem>>, vector<8x1xf32>
    %7 = arith.maximumf %6, %5 : vector<8x1xf32>
    %8 = arith.subf %6, %7 : vector<8x1xf32>
    %9 = math.exp %8 : vector<8x1xf32>
    %c0_4 = arith.constant 0 : index
    %c0_5 = arith.constant 0 : index
    %10 = vector.load %arg5[%c0_4, %c0_5] : memref<8x1xf32, #tpu.memory_space<vmem>>, vector<8x1xf32>
    %11 = arith.mulf %9, %10 : vector<8x1xf32>
    %12 = vector.broadcast %7 : vector<8x1xf32> to vector<8x100xf32>
    %13 = arith.subf %3, %12 : vector<8x100xf32>
    %14 = math.exp %13 : vector<8x100xf32>
    %cst_6 = arith.constant dense<0.000000e+00> : vector<8xf32>
    %15 = vector.multi_reduction <add>, %14, %cst_6 [1] : vector<8x100xf32> to vector<8xf32>
    %16 = vector.shape_cast %15 : vector<8xf32> to vector<8x1xf32>
    %17 = arith.addf %11, %16 : vector<8x1xf32>
    %c0_7 = arith.constant 0 : index
    %c0_8 = arith.constant 0 : index
    %18 = vector.load %arg5[%c0_7, %c0_8] : memref<8x1xf32, #tpu.memory_space<vmem>>, vector<8x1xf32>
    tpu.vector_store %arg5[%c0_7, %c0_8], %17 {strides = array<i32>} : memref<8x1xf32, #tpu.memory_space<vmem>>, vector<8x1xf32>,
    %c0_9 = arith.constant 0 : index
    %c0_10 = arith.constant 0 : index
    %19 = vector.load %arg4[%c0_9, %c0_10] : memref<8x1xf32, #tpu.memory_space<vmem>>, vector<8x1xf32>
    tpu.vector_store %arg4[%c0_9, %c0_10], %7 {strides = array<i32>} : memref<8x1xf32, #tpu.memory_space<vmem>>, vector<8x1xf32>,
    %c0_i32_11 = arith.constant 0 : i32
    %20 = arith.cmpi eq, %arg1, %c0_i32_11 : i32
    %21 = arith.extui %20 : i1 to i32
    %c0_i32_12 = arith.constant 0 : i32
    %22 = arith.cmpi ne, %21, %c0_i32_12 : i32
    scf.if %22 {
      %c0_13 = arith.constant 0 : index
      %c0_14 = arith.constant 0 : index
      %23 = vector.load %arg4[%c0_13, %c0_14] : memref<8x1xf32, #tpu.memory_space<vmem>>, vector<8x1xf32>
      %c0_15 = arith.constant 0 : index
      %c0_16 = arith.constant 0 : index
      %24 = vector.load %arg5[%c0_15, %c0_16] : memref<8x1xf32, #tpu.memory_space<vmem>>, vector<8x1xf32>
      %25 = math.log %24 : vector<8x1xf32>
      %26 = arith.addf %23, %25 : vector<8x1xf32>
      %c0_17 = arith.constant 0 : index
      %c0_18 = arith.constant 0 : index
      %27 = vector.load %arg3[%c0_17, %c0_18] : memref<8x1xf32, #tpu.memory_space<vmem>>, vector<8x1xf32>
      tpu.vector_store %arg3[%c0_17, %c0_18], %26 {strides = array<i32>} : memref<8x1xf32, #tpu.memory_space<vmem>>, vector<8x1xf32>,
    } else {
    }
    return
  }
  func.func @transform_0(%arg0: i32, %arg1: i32) -> (i32, i32) {
    %c0_i32 = arith.constant 0 : i32
    return %arg0, %arg1 : i32, i32
  }
  func.func @transform_1(%arg0: i32, %arg1: i32) -> (i32, i32) {
    %c0_i32 = arith.constant 0 : i32
    %c0_i32_0 = arith.constant 0 : i32
    return %arg0, %c0_i32 : i32, i32
  }
}

</mosaic_0001>

<llo_original>
// kernel: tpu_custom_call.1
$region0: #{tpu_custom_call.1}
  #allocation0 [shape = 'u32[]', space=smem, size = 0x4, offset = 0x4, fixed_abs, tag = 'smem constant byte address 0x4 - core index']
  #allocation1 [shape = 'u32[72,128]{1,0:T(1,128)}', space=vmem, size = 0x9000, scoped, tag = 'internal scratch']
  #allocation2 [shape = 'f32[8,1]{1,0:T(8,128)}', space=vmem, size = 0x1000, scoped, tag = 'scratch operand']
  #allocation3 [shape = 'f32[8,1]{1,0:T(8,128)}', space=vmem, size = 0x1000, scoped, tag = 'scratch operand']
  %s0 = inlined_call_operand.hbm [shape: f32[8,100], index: 0, kind: input, shape index: {}]
  %s1 = inlined_call_operand.vmem [shape: f32[8,1], index: 1, kind: output, shape index: {}]
  %s2 = sld [smem:[#allocation0]]
  $region26: #{tpu_custom_call.1} parent=0
    _
  %s4 = ssub.s32 1, %s2
  %s5 = scalar_select 0, %s4, %s2
  $region1: #{tpu_custom_call.1} parent=0
    #allocation4 [shape = 'u8[4096]{0}', space=vmem, size = 0x1000, scoped, tag = 'input window, operand 0, single buffered']
    #allocation5 [shape = 's32[1]{0}', space=sflag, size = 0x4, scoped, tag = 'scoped memory for tpu_custom_call.1']
    %6 = vsyncpa [#allocation5], 0
    // Predicated region
    $region2: #{tpu_custom_call.1} parent=1 // pred_check
      _
    $region3: #{tpu_custom_call.1} parent=1 // pred_check_branch
      %8 = sbr.rel (0) target = $region5
    $region4: #{tpu_custom_call.1} parent=1 // pred_region
      %10 = vsyncadd [#allocation5], 0
      %s12 = sshll.u32 %s0, 4
      %s13 = int_to_ptr.hbm [resolvable:$true] %s12
      %s14 = sshll.u32 [#allocation4], 4
      %s15 = int_to_ptr.vmem [resolvable:$true] %s14
      %17 = dma.hbm_to_vmem [thread:$0]  %s13, 128, %s15, [#allocation5]
    $region5: #{tpu_custom_call.1} parent=1 // pred_fallthru
      _
    // Predicated region
    $region6: #{tpu_custom_call.1} parent=1 // pred_check
      _
    $region7: #{tpu_custom_call.1} parent=1 // pred_check_branch
      %19 = sbr.rel (0) target = $region9
    $region8: #{tpu_custom_call.1} parent=1 // pred_region
      %21 = dma.done [#allocation5], 128
    $region9: #{tpu_custom_call.1} parent=1 // pred_fallthru
      _
    %p22 = scmp.eq.s32.totalorder 0, 0
    // Predicated region
    $region10: #{tpu_custom_call.1} parent=1 // pred_check
      %p23 = pneg %p22
    $region11: #{tpu_custom_call.1} parent=1 // pred_check_branch
      %25 = sbr.rel (%p23) target = $region13
    $region12: #{tpu_custom_call.1} parent=1 // pred_region
      %vm26 = vcmask 7168
      %27 = vst.msk [vmem:[#allocation2] sm:$0xff] %vm26, -inf
      %28 = vst.msk [vmem:[#allocation3] sm:$0xff] %vm26, 0.0
    $region13: #{tpu_custom_call.1} parent=1 // pred_fallthru
      _
    %v29 = vld [vmem:[#allocation4] sm:$0xff]
    %vm30 = vcmask 818176
    %v31 = vsel %vm30, %v29, -inf
    %32 = vmax.xlane.f32.xlu0 %v31
    %v33 = vpop.xlane.xlu0 %32
    %v34 = vld [vmem:[#allocation2] sm:$0xff]
    %v35 = vmax.f32 %v34, %v33
    %v36 = vsub.f32 %v34, %v35
    %v37 = vmul.f32 %v36, 1.442695
    %v38 = vpow.pop %v37
    %v39 = vld [vmem:[#allocation3] sm:$0xff]
    %v40 = vmul.f32 %v38, %v39
    %42 = vset.pattern.permute.xlu0 0
    %43 = vperm.xlu0 %42, %v35
    %v44 = vpop.permute.xlu0 %43
    %v46 = vsub.f32 %v29, %v44
    %v47 = vmul.f32 %v46, 1.442695
    %v48 = vpow.pop %v47
    %v49 = vsel %vm30, %v48, 0.0
    %50 = vadd.xlane.f32.xlu0 %v49
    %v51 = vpop.xlane.xlu0 %50
    %v52 = vadd.f32 %v40, %v51
    %vm53 = vcmask 7168
    %54 = vst.msk [vmem:[#allocation3] sm:$0xff] %vm53, %v52
    %55 = vst.msk [vmem:[#allocation2] sm:$0xff] %vm53, %v35
    // Predicated region
    $region14: #{tpu_custom_call.1} parent=1 // pred_check
      %p56 = pneg %p22
    $region15: #{tpu_custom_call.1} parent=1 // pred_check_branch
      %58 = sbr.rel (%p56) target = $region17
    $region16: #{tpu_custom_call.1} parent=1 // pred_region
      %v59 = vld [vmem:[#allocation2] sm:$0xff]
      %v60 = vld [vmem:[#allocation3] sm:$0xff]
      %v61 = vlog2.pop %v60
      %v62 = vmul.f32 %v61, 0.6931472
      %v63 = vadd.f32 %v59, %v62
      %64 = vst.msk [vmem:[%s1] sm:$0xff] %vm53, %v63
    $region17: #{tpu_custom_call.1} parent=1 // pred_fallthru
      _
    // Predicated region
    $region18: #{tpu_custom_call.1} parent=1 // pred_check
      _
    $region19: #{tpu_custom_call.1} parent=1 // pred_check_branch
      %66 = sbr.rel (0) target = $region21
    $region20: #{tpu_custom_call.1} parent=1 // pred_region
      _
    $region21: #{tpu_custom_call.1} parent=1 // pred_fallthru
      _
    // Predicated region
    $region22: #{tpu_custom_call.1} parent=1 // pred_check
      _
    $region23: #{tpu_custom_call.1} parent=1 // pred_check_branch
      %68 = sbr.rel (0) target = $region25
    $region24: #{tpu_custom_call.1} parent=1 // pred_region
      _
    $region25: #{tpu_custom_call.1} parent=1 // pred_fallthru
      _
    %69 = vsyncpa [#allocation5], 1

</llo_original>
